<compile_context>
chip_gen: v7x
topology: tpu7x:2x2x1
jax: 0.10.0
libtpu: 0.0.40
codegen_flags: <defaults>
</compile_context>

<pallas_src>
import jax
import jax.numpy as jnp
from jax import lax
from jax.experimental import pallas as pl
from jax.experimental.pallas import tpu as pltpu


def _round_up(x, m):
    return ((x + m - 1) // m) * m


def _vmem_capacity_bytes():
    try:
        info = pltpu.get_tpu_info()
        cap = getattr(info, "vmem_capacity_bytes", None)
        if cap:
            return int(cap)
    except Exception:
        pass
    return 64 * 1024 * 1024  # conservative default: v7x per-TensorCore VMEM


def _sigmoid_mask_rotated_kernel(base_ref, src_ref, rot_ref, masks_ref, temp_ref,
                                 out_ref, acc_ref):
    """One (row-tile i, rotated-dim panel k) grid step.

    Uses the orthogonality of R:  out = base + ((source - base) @ R * m) @ R.T,
    accumulated over rotated-dim panels in an f32 scratch.
    """
    k = pl.program_id(1)

    @pl.when(k == 0)
    def _init():
        acc_ref[...] = jnp.zeros_like(acc_ref)

    cmp_dtype = rot_ref.dtype
    r = rot_ref[...]                                                  # (D, TN)
    diff = (src_ref[...].astype(jnp.float32)
            - base_ref[...].astype(jnp.float32)).astype(cmp_dtype)    # (TM, D)

    # Forward rotation of the difference onto this panel of rotated coordinates.
    rd = jnp.dot(diff, r, preferred_element_type=jnp.float32)         # (TM, TN) f32

    # Soft boundary mask for this panel (EUP work, negligible).
    m = jax.nn.sigmoid(masks_ref[...] / temp_ref[0])                  # (1, TN) f32
    proj = (m * rd).astype(cmp_dtype)                                 # (TM, TN)

    # Back-rotation: proj @ R_panel.T (contract both on their last dim; native
    # transposed-RHS matmul -- no explicit D x D transpose is materialized).
    acc_ref[...] += lax.dot_general(
        proj, r,
        dimension_numbers=(((1,), (1,)), ((), ())),
        preferred_element_type=jnp.float32)

    @pl.when(k == pl.num_programs(1) - 1)
    def _finish():
        out_ref[...] = (base_ref[...].astype(jnp.float32)
                        + acc_ref[...]).astype(out_ref.dtype)


class SigmoidMaskRotatedSpaceIntervention:
    """JAX/Pallas port of pyvene's SigmoidMaskRotatedSpaceIntervention forward."""

    def __init__(self, embed_dim, key, dtype=jnp.float32, compute_dtype=None,
                 block_rows=None, block_cols=None, **kwargs):
        self.embed_dim = embed_dim
        # Orthogonal rotation weight (stand-in for torch's orthogonal
        # parametrization of RotateLayer): QR of a random Gaussian matrix.
        q, _ = jnp.linalg.qr(
            jax.random.normal(key, (embed_dim, embed_dim), dtype=jnp.float32))
        self.rotate_weight = q.astype(dtype)                 # (D, D)
        self.masks = jnp.full((embed_dim,), 100.0, dtype=jnp.float32)
        self.temperature = jnp.float32(50.0)
        # None -> auto: bf16 MXU for <=16-bit activations, f32 for f32 activations.
        # Pass jnp.bfloat16 explicitly for the fast MXU path on f32 activations.
        self.compute_dtype = compute_dtype
        self.block_rows = block_rows                         # manual tile override
        self.block_cols = block_cols                         # manual panel override
        self.subspace_partition = kwargs.get("subspace_partition", None)
        self.use_fast = kwargs.get("use_fast", False)
        self.trainble = True

    def get_temperature(self):
        return self.temperature

    def set_temperature(self, temp):
        self.temperature = jnp.float32(temp)

    def set_interchange_dim(self, interchange_dim):
        # Matches the PyTorch module: the boundary is learned, not settable.
        raise AssertionError("interchange dim is learned and can not be set")

    # ------------------------------------------------------------------ tiles --
    def _select_tiles(self, M, D, in_bytes, out_bytes, cmp_bytes):
        cap = _vmem_capacity_bytes()
        budget = int(cap * 0.6)          # headroom for compiler temporaries/spills

        # Native sublane tile per element size: f32 -> 8 rows, bf16/f16 -> 16.
        row_align = 8 * max(1, 4 // in_bytes)

        # Rotated-dim panel width TN: stream column panels of R whenever the
        # double-buffered full weight would exceed ~half the budget.
        if self.block_cols is not None:
            tn = self.block_cols
        elif D % 128 != 0 or 2 * D * D * cmp_bytes <= budget // 2:
            tn = D                       # fully resident R (constant index_map)
        else:
            tn = 128
            for ndiv in range(D // 128, 0, -1):
                if (D // 128) % ndiv == 0 and \
                        2 * D * (ndiv * 128) * cmp_bytes <= budget // 2:
                    tn = ndiv * 128
                    break
        r_bytes = 2 * D * tn * cmp_bytes

        if self.block_rows is not None:
            tm = self.block_rows
        elif M < 2 * row_align:
            tm = M                       # single full-row tile (tiny inputs)
        else:
            # Per-row VMEM: double-buffered base/src/out blocks, f32 accumulator,
            # plus allowance for in-kernel temporaries (diff, rd, proj).
            per_row = D * (2 * in_bytes + 2 * in_bytes + 2 * out_bytes
                           + 4 + 4 + cmp_bytes) + tn * (4 + cmp_bytes)
            tm = max(1, (budget - r_bytes) // per_row)
            tm = max(row_align, (tm // row_align) * row_align)
            tm = min(tm, 512)
            # Guarantee >= 2 row tiles so the "parallel" axis can split across
            # v7x's two TensorCores (free on single-TC v5e / v6e).
            tm = min(tm, _round_up(pl.cdiv(M, 2), row_align))
            tm = max(tm, row_align)
        return tm, tn

    # ---------------------------------------------------------------- forward --
    def __call__(self, base, source, subspace=None):
        # TODO(synk): subspace_partition-restricted masking is not implemented
        # (the reference PyTorch forward ignores `subspace` as well).
        assert subspace is None
        assert base.shape == source.shape and base.dtype == source.dtype
        D = self.embed_dim
        assert base.shape[-1] == D

        cmp_dtype = self.compute_dtype
        if cmp_dtype is None:
            cmp_dtype = (jnp.bfloat16 if jnp.dtype(base.dtype).itemsize <= 2
                         else jnp.float32)
        cmp_dtype = jnp.dtype(cmp_dtype)

        lead = base.shape[:-1]
        M = 1
        for s in lead:
            M *= s
        base2 = base.reshape(M, D)
        src2 = source.reshape(M, D)

        in_bytes = jnp.dtype(base.dtype).itemsize
        out_bytes = in_bytes
        cmp_bytes = cmp_dtype.itemsize

        tm, tn = self._select_tiles(M, D, in_bytes, out_bytes, cmp_bytes)
        grid = (pl.cdiv(M, tm), pl.cdiv(D, tn))

        rot = self.rotate_weight.astype(cmp_dtype)
        masks2 = self.masks.reshape(1, D).astype(jnp.float32)
        temp = jnp.asarray(self.temperature, jnp.float32).reshape(1,)

        # Scoped-VMEM limit sized from the chosen tiles (the 16/32 MiB defaults
        # would otherwise throttle or fail large-D / large-TM configurations).
        cap = _vmem_capacity_bytes()
        est = (2 * D * tn * cmp_bytes
               + tm * D * (2 * in_bytes + 2 * in_bytes + 2 * out_bytes + 4)
               + tm * D * (4 + cmp_bytes)
               + tm * tn * (4 + cmp_bytes))
        vmem_limit = int(min(0.9 * cap, max(32 * 1024 * 1024, 1.5 * est)))

        out2 = pl.pallas_call(
            _sigmoid_mask_rotated_kernel,
            out_shape=jax.ShapeDtypeStruct((M, D), base.dtype),
            grid=grid,
            in_specs=[
                pl.BlockSpec((tm, D), lambda i, k: (i, 0)),   # base rows (held over k)
                pl.BlockSpec((tm, D), lambda i, k: (i, 0)),   # source rows
                pl.BlockSpec((D, tn), lambda i, k: (0, k)),   # R column panel
                pl.BlockSpec((1, tn), lambda i, k: (0, k)),   # masks panel
                pl.BlockSpec(memory_space=pltpu.MemorySpace.SMEM),  # temperature
            ],
            out_specs=pl.BlockSpec((tm, D), lambda i, k: (i, 0)),
            scratch_shapes=[pltpu.VMEM((tm, D), jnp.float32)],
            compiler_params=pltpu.CompilerParams(
                dimension_semantics=("parallel", "arbitrary"),
                vmem_limit_bytes=vmem_limit,
            ),
        )(base2, src2, rot, masks2, temp)
        return out2.reshape(*lead, D)


# ---------------------------------------------------------------- references --
def _reference_forward_literal(base, source, R, masks, temperature):
    """Literal port of the PyTorch forward (3 matmuls, full f32 precision)."""
    rb = jnp.matmul(base, R, precision=lax.Precision.HIGHEST)
    rs = jnp.matmul(source, R, precision=lax.Precision.HIGHEST)
    m = jax.nn.sigmoid(masks / temperature)
    ro = (1.0 - m) * rb + m * rs
    return jnp.matmul(ro, R.T, precision=lax.Precision.HIGHEST).astype(base.dtype)


def _reference_forward_shortcut(base, source, R, masks, temperature, compute_dtype):
    """Orthogonality-shortcut reference with the same operand casts as the kernel."""
    cd = jnp.dtype(compute_dtype)
    Rc = R.astype(cd)
    diff = (source.astype(jnp.float32) - base.astype(jnp.float32)).astype(cd)
    rd = jnp.matmul(diff, Rc, preferred_element_type=jnp.float32)
    m = jax.nn.sigmoid(masks.astype(jnp.float32) / temperature)
    proj = (m * rd).astype(cd)
    back = jnp.matmul(proj, Rc.T, preferred_element_type=jnp.float32)
    return (base.astype(jnp.float32) + back).astype(base.dtype)


if __name__ == "__main__":
    key = jax.random.PRNGKey(0)
    k_rot, k_base, k_src, k_rot2, k_base2, k_src2 = jax.random.split(key, 6)

    # --- Test 1: small f32 forward vs the literal 3-matmul (HIGHEST) reference.
    batch, seq, hidden = 2, 8, 32
    base = jax.random.normal(k_base, (batch, seq, hidden), dtype=jnp.float32)
    source = jax.random.normal(k_src, (batch, seq, hidden), dtype=jnp.float32)

    intervention = SigmoidMaskRotatedSpaceIntervention(embed_dim=hidden, key=k_rot)
    out = jax.block_until_ready(intervention(base, source))
    ref = _reference_forward_literal(base, source, intervention.rotate_weight,
                                     intervention.masks, intervention.temperature)
    assert out.shape == base.shape and out.dtype == base.dtype
    assert jnp.allclose(out, ref, atol=1e-3, rtol=1e-3), "mismatch vs literal reference"

    # Different temperature -> confirm no stale constants are baked in.
    intervention.set_temperature(10.0)
    out2 = jax.block_until_ready(intervention(base, source))
    ref2 = _reference_forward_literal(base, source, intervention.rotate_weight,
                                      intervention.masks, intervention.temperature)
    assert jnp.allclose(out2, ref2, atol=1e-3, rtol=1e-3), "mismatch after set_temperature"

    # --- Test 2: bf16 MXU path + panel-streamed R + multi-row-tile parallel grid.
    batch2, seq2, hidden2 = 2, 64, 256
    base_b = jax.random.normal(k_base2, (batch2, seq2, hidden2), dtype=jnp.float32)
    src_b = jax.random.normal(k_src2, (batch2, seq2, hidden2), dtype=jnp.float32)
    interv_b = SigmoidMaskRotatedSpaceIntervention(
        embed_dim=hidden2, key=k_rot2, compute_dtype=jnp.bfloat16,
        block_rows=64, block_cols=128)   # grid = (2 row tiles, 2 rotated panels)
    out_b = jax.block_until_ready(interv_b(base_b, src_b))
    ref_b = _reference_forward_shortcut(base_b, src_b, interv_b.rotate_weight,
                                        interv_b.masks, interv_b.temperature,
                                        jnp.bfloat16)
    assert out_b.shape == base_b.shape and out_b.dtype == base_b.dtype
    assert jnp.allclose(out_b, ref_b, atol=2e-2, rtol=2e-2), "mismatch on bf16/panel path"

    print("KERNEL_OK")
</pallas_src>

<mosaic_0001>
module attributes {stable_mosaic.version = 11 : i64} {
  func.func @_sigmoid_mask_rotated_kernel(%arg0: i32, %arg1: i32, %arg2: memref<8x32xf32, #tpu.memory_space<vmem>>, %arg3: memref<8x32xf32, #tpu.memory_space<vmem>>, %arg4: memref<32x32xf32, #tpu.memory_space<vmem>>, %arg5: memref<1x32xf32, #tpu.memory_space<vmem>>, %arg6: memref<1xf32, #tpu.memory_space<smem>>, %arg7: memref<8x32xf32, #tpu.memory_space<vmem>>, %arg8: memref<8x32xf32, #tpu.memory_space<vmem>>) attributes {dimension_semantics = [#tpu.dimension_semantics<parallel>, #tpu.dimension_semantics<arbitrary>], iteration_bounds = array<i64: 2, 1>, scalar_prefetch = 0 : i64, scratch_operands = 1 : i64, tpu.core_type = #tpu.core_type<tc>, window_params = [{transform_indices = @transform_0, window_bounds = array<i64: 8, 32>}, {transform_indices = @transform_1, window_bounds = array<i64: 8, 32>}, {transform_indices = @transform_2, window_bounds = array<i64: 32, 32>}, {transform_indices = @transform_3, window_bounds = array<i64: 1, 32>}, {transform_indices = @transform_4, window_bounds = array<i64: 1>}, {transform_indices = @transform_5, window_bounds = array<i64: 8, 32>}]} {
    %c0_i32 = arith.constant 0 : i32
    %0 = arith.cmpi eq, %arg1, %c0_i32 : i32
    %1 = arith.extui %0 : i1 to i32
    %c0_i32_0 = arith.constant 0 : i32
    %2 = arith.cmpi ne, %1, %c0_i32_0 : i32
    scf.if %2 {
      %cst_17 = arith.constant 0.000000e+00 : f32
      %26 = vector.broadcast %cst_17 : f32 to vector<8x32xf32>
      %c0_18 = arith.constant 0 : index
      %c0_19 = arith.constant 0 : index
      %27 = vector.load %arg8[%c0_18, %c0_19] : memref<8x32xf32, #tpu.memory_space<vmem>>, vector<8x32xf32>
      tpu.vector_store %arg8[%c0_18, %c0_19], %26 {strides = array<i32>} : memref<8x32xf32, #tpu.memory_space<vmem>>, vector<8x32xf32>,
    } else {
    }
    %c0 = arith.constant 0 : index
    %c0_1 = arith.constant 0 : index
    %3 = vector.load %arg4[%c0, %c0_1] : memref<32x32xf32, #tpu.memory_space<vmem>>, vector<32x32xf32>
    %c0_2 = arith.constant 0 : index
    %c0_3 = arith.constant 0 : index
    %4 = vector.load %arg3[%c0_2, %c0_3] : memref<8x32xf32, #tpu.memory_space<vmem>>, vector<8x32xf32>
    %c0_4 = arith.constant 0 : index
    %c0_5 = arith.constant 0 : index
    %5 = vector.load %arg2[%c0_4, %c0_5] : memref<8x32xf32, #tpu.memory_space<vmem>>, vector<8x32xf32>
    %6 = arith.subf %4, %5 : vector<8x32xf32>
    %cst = arith.constant dense<0.000000e+00> : vector<8x32xf32>
    %7 = tpu.matmul %6, %3, %cst {dimension_numbers = #tpu.dot_dimension_numbers<[1], [0], [0], [1], [0, 0, 1, 1], [], []>} : vector<8x32xf32>, vector<32x32xf32>, vector<8x32xf32> -> vector<8x32xf32>
    %c0_6 = arith.constant 0 : index
    %c0_7 = arith.constant 0 : index
    %8 = vector.load %arg5[%c0_6, %c0_7] : memref<1x32xf32, #tpu.memory_space<vmem>>, vector<1x32xf32>
    %c0_8 = arith.constant 0 : index
    %9 = memref.load %arg6[%c0_8] : memref<1xf32, #tpu.memory_space<smem>>
    %10 = vector.broadcast %9 : f32 to vector<1x32xf32>
    %11 = arith.divf %8, %10 : vector<1x32xf32>
    %12 = arith.negf %11 : vector<1x32xf32>
    %13 = math.exp %12 : vector<1x32xf32>
    %cst_9 = arith.constant 1.000000e+00 : f32
    %14 = vector.broadcast %cst_9 : f32 to vector<1x32xf32>
    %15 = arith.addf %14, %13 : vector<1x32xf32>
    %16 = arith.divf %14, %15 : vector<1x32xf32>
    %17 = vector.broadcast %16 : vector<1x32xf32> to vector<8x32xf32>
    %18 = arith.mulf %17, %7 : vector<8x32xf32>
    %c0_10 = arith.constant 0 : index
    %c0_11 = arith.constant 0 : index
    %19 = vector.load %arg8[%c0_10, %c0_11] : memref<8x32xf32, #tpu.memory_space<vmem>>, vector<8x32xf32>
    %cst_12 = arith.constant dense<0.000000e+00> : vector<8x32xf32>
    %20 = tpu.matmul %18, %3, %cst_12 {dimension_numbers = #tpu.dot_dimension_numbers<[1], [1], [0], [0], [0, 0, 1, 0], [], []>} : vector<8x32xf32>, vector<32x32xf32>, vector<8x32xf32> -> vector<8x32xf32>
    %21 = arith.addf %19, %20 : vector<8x32xf32>
    %c0_13 = arith.constant 0 : index
    %c0_14 = arith.constant 0 : index
    %22 = vector.load %arg8[%c0_13, %c0_14] : memref<8x32xf32, #tpu.memory_space<vmem>>, vector<8x32xf32>
    tpu.vector_store %arg8[%c0_13, %c0_14], %21 {strides = array<i32>} : memref<8x32xf32, #tpu.memory_space<vmem>>, vector<8x32xf32>,
    %c0_i32_15 = arith.constant 0 : i32
    %23 = arith.cmpi eq, %arg1, %c0_i32_15 : i32
    %24 = arith.extui %23 : i1 to i32
    %c0_i32_16 = arith.constant 0 : i32
    %25 = arith.cmpi ne, %24, %c0_i32_16 : i32
    scf.if %25 {
      %c0_17 = arith.constant 0 : index
      %c0_18 = arith.constant 0 : index
      %26 = vector.load %arg2[%c0_17, %c0_18] : memref<8x32xf32, #tpu.memory_space<vmem>>, vector<8x32xf32>
      %c0_19 = arith.constant 0 : index
      %c0_20 = arith.constant 0 : index
      %27 = vector.load %arg8[%c0_19, %c0_20] : memref<8x32xf32, #tpu.memory_space<vmem>>, vector<8x32xf32>
      %28 = arith.addf %26, %27 : vector<8x32xf32>
      %c0_21 = arith.constant 0 : index
      %c0_22 = arith.constant 0 : index
      %29 = vector.load %arg7[%c0_21, %c0_22] : memref<8x32xf32, #tpu.memory_space<vmem>>, vector<8x32xf32>
      tpu.vector_store %arg7[%c0_21, %c0_22], %28 {strides = array<i32>} : memref<8x32xf32, #tpu.memory_space<vmem>>, vector<8x32xf32>,
    } else {
    }
    return
  }
  func.func @transform_0(%arg0: i32, %arg1: i32) -> (i32, i32) {
    %c0_i32 = arith.constant 0 : i32
    %c0_i32_0 = arith.constant 0 : i32
    return %arg0, %c0_i32 : i32, i32
  }
  func.func @transform_1(%arg0: i32, %arg1: i32) -> (i32, i32) {
    %c0_i32 = arith.constant 0 : i32
    %c0_i32_0 = arith.constant 0 : i32
    return %arg0, %c0_i32 : i32, i32
  }
  func.func @transform_2(%arg0: i32, %arg1: i32) -> (i32, i32) {
    %c0_i32 = arith.constant 0 : i32
    %c0_i32_0 = arith.constant 0 : i32
    return %c0_i32, %arg1 : i32, i32
  }
  func.func @transform_3(%arg0: i32, %arg1: i32) -> (i32, i32) {
    %c0_i32 = arith.constant 0 : i32
    %c0_i32_0 = arith.constant 0 : i32
    return %c0_i32, %arg1 : i32, i32
  }
  func.func @transform_4(%arg0: i32, %arg1: i32) -> i32 {
    %c0_i32 = arith.constant 0 : i32
    %c0_i32_0 = arith.constant 0 : i32
    return %c0_i32 : i32
  }
  func.func @transform_5(%arg0: i32, %arg1: i32) -> (i32, i32) {
    %c0_i32 = arith.constant 0 : i32
    %c0_i32_0 = arith.constant 0 : i32
    return %arg0, %c0_i32 : i32, i32
  }
}

</mosaic_0001>

<llo_original>
// kernel: tpu_custom_call.1
$region0: #{tpu_custom_call.1}
  #allocation0 [shape = 'u32[]', space=smem, size = 0x4, offset = 0x4, fixed_abs, tag = 'smem constant byte address 0x4 - core index']
  #allocation1 [shape = 'u32[144,128]{1,0:T(1,128)}', space=vmem, size = 0x12000, scoped, tag = 'internal scratch']
  #allocation2 [shape = 'f32[8,32]{1,0:T(8,128)}', space=vmem, size = 0x1000, scoped, tag = 'scratch operand']
  #allocation3 [shape = 'f32[1]{0:T(128)S(6)}', space=smem, size = 0x200, scoped, tag = 'scoped memory for tpu_custom_call.1']
  %s0 = inlined_call_operand.hbm [shape: f32[16,32], index: 0, kind: input, shape index: {}]
  %s1 = inlined_call_operand.hbm [shape: f32[16,32], index: 1, kind: input, shape index: {}]
  %s2 = inlined_call_operand.hbm [shape: f32[32,32], index: 2, kind: input, shape index: {}]
  %s3 = inlined_call_operand.vmem [shape: f32[1,32], index: 3, kind: input, shape index: {}]
  %s4 = inlined_call_operand.<no memory space> [shape: f32[1], index: 4, kind: input, shape index: {}]
  %s5 = inlined_call_operand.hbm [shape: f32[16,32], index: 5, kind: output, shape index: {}]
  %s6 = sld [smem:[#allocation0]]
  $region73: #{tpu_custom_call.1} parent=0
    _
  %s8 = ssub.s32 1, %s6
  %s9 = scalar_select 0, %s8, %s6
  %10 = sst [smem:[#allocation3]] %s4
  $region1: #{tpu_custom_call.1} parent=0
    #allocation4 [shape = 'u8[8192]{0}', space=vmem, size = 0x2000, scoped, tag = 'input window, operand 0']
    #allocation5 [shape = 's32[2]{0}', space=sflag, size = 0x8, scoped, tag = 'scoped memory for tpu_custom_call.1']
    #allocation6 [shape = 's32[2]{0}', space=sflag, size = 0x8, scoped, tag = 'scoped memory for tpu_custom_call.1']
    #allocation7 [shape = 'u8[8192]{0}', space=vmem, size = 0x2000, scoped, tag = 'input window, operand 1']
    #allocation8 [shape = 's32[2]{0}', space=sflag, size = 0x8, scoped, tag = 'scoped memory for tpu_custom_call.1']
    #allocation9 [shape = 'u8[16384]{0}', space=vmem, size = 0x4000, scoped, tag = 'input window, operand 2, single buffered']
    #allocation10 [shape = 'u8[8192]{0}', space=vmem, size = 0x2000, scoped, tag = 'output window, operand 0']
    %11 = vsyncpa [#allocation5], 0
    %s12 = scalar_lea.sflag [#allocation5], 1
    %13 = vsyncpa %s12, 0
    %14 = vsyncpa [#allocation8], 0
    %s15 = scalar_lea.sflag [#allocation8], 1
    %16 = vsyncpa %s15, 0
    %17 = vsyncpa [#allocation6], 0
    %s18 = scalar_lea.sflag [#allocation6], 1
    %19 = vsyncpa %s18, 0
    loop: start=0, step=1, limit=4
    $region2: #{tpu_custom_call.1} parent=1 // loop_pre_header
      _
    $region3: #{tpu_custom_call.1} parent=1 // loop_header
      %s21 = sphi 0, %s25
      %p22 = scmp.ge.s32.totalorder %s21, 4
      %s28 = sphi 0, %s40
      %s29 = sphi 0, %s36
      %s30 = sphi 0, %s28
      %s31 = sphi 0, %s29
      %s32 = sphi 0, %s30
      %s33 = sphi 0, %s31
      %s43 = sphi 0, %s45
      %s46 = sphi 0, %s43
      %s47 = sphi 0, %s46
      %s63 = sphi 0, %s47
      %s69 = sphi 0, %s71
      %s72 = sphi 0, %s69
      %s73 = sphi 0, %s72
      %s89 = sphi 0, %s73
      %s95 = sphi 0, %s97
      %s98 = sphi 0, %s95
      %s99 = sphi 0, %s98
      %s115 = sphi 0, %s99
      %s121 = sphi 0, %s123
      %s124 = sphi 0, %s121
      %s125 = sphi 0, %s124
      %s141 = sphi 0, %s125
      %s145 = sphi 0, %s145
      %s147 = sphi 0, %s145
      %s148 = sphi 0, %s147
      %s162 = sphi 0, %s148
      %s168 = sphi 0, %s170
      %s171 = sphi 0, %s168
      %s172 = sphi 0, %s171
      %s188 = sphi 0, %s172
    $region4: #{tpu_custom_call.1} parent=1 // loop_header_branch
      %24 = sbr.rel (%p22) target = $region8
    $region5: #{tpu_custom_call.1} parent=1 // loop_body
      %s26 = ssub.s32 %s21, 1
      %s27 = ssub.s32 %s21, 2
      %s34 = sadd.s32 1, %s29
      %p35 = scmp.ge.s32.totalorder %s34, 1
      %s36 = scalar_select %p35, 0, %s34
      %s37 = sadd.s32 1, %s28
      %s38 = scalar_select %p35, %s37, %s28
      %p39 = scmp.ge.s32.totalorder %s38, 2
      %s40 = scalar_select %p39, 0, %s38
      %s41 = ssub.s32 %s28, %s40
      %p42 = scmp.eq.s32.totalorder %s41, 0
      %s44 = sadd.s32 %s43, 1
      %s45 = scalar_select %p42, %s43, %s44
      %p48 = pneg %p42
      %p49 = scmp.eq.s32.totalorder %s21, 1
      %p50 = por %p48, %p49
      %p51 = scmp.ne.s32.totalorder %s43, %s46
      %p52 = scmp.eq.s32.totalorder %s21, 0
      %p53 = por %p51, %p52
      %p54 = scmp.ne.s32.totalorder %s43, %s46
      %p55 = scmp.eq.s32.totalorder %s26, 1
      %p56 = por %p54, %p55
      %p57 = scmp.ne.s32.totalorder %s46, %s47
      %p58 = scmp.eq.s32.totalorder %s26, 0
      %p59 = por %p57, %p58
      %p60 = scmp.ne.s32.totalorder %s46, %s47
      %p61 = scmp.eq.s32.totalorder %s27, 1
      %p62 = por %p60, %p61
      %p64 = scmp.ne.s32.totalorder %s47, %s63
      %p65 = scmp.eq.s32.totalorder %s27, 0
      %p66 = por %p64, %p65
      %s67 = ssub.s32 %s28, %s40
      %p68 = scmp.eq.s32.totalorder %s67, 0
      %s70 = sadd.s32 %s69, 1
      %s71 = scalar_select %p68, %s69, %s70
      %p74 = pneg %p68
      %p75 = scmp.eq.s32.totalorder %s21, 1
      %p76 = por %p74, %p75
      %p77 = scmp.ne.s32.totalorder %s69, %s72
      %p78 = scmp.eq.s32.totalorder %s21, 0
      %p79 = por %p77, %p78
      %p80 = scmp.ne.s32.totalorder %s69, %s72
      %p81 = scmp.eq.s32.totalorder %s26, 1
      %p82 = por %p80, %p81
      %p83 = scmp.ne.s32.totalorder %s72, %s73
      %p84 = scmp.eq.s32.totalorder %s26, 0
      %p85 = por %p83, %p84
      %p86 = scmp.ne.s32.totalorder %s72, %s73
      %p87 = scmp.eq.s32.totalorder %s27, 1
      %p88 = por %p86, %p87
      %p90 = scmp.ne.s32.totalorder %s73, %s89
      %p91 = scmp.eq.s32.totalorder %s27, 0
      %p92 = por %p90, %p91
      %s93 = ssub.s32 %s29, %s36
      %p94 = scmp.eq.s32.totalorder %s93, 0
      %s96 = sadd.s32 %s95, 1
      %s97 = scalar_select %p94, %s95, %s96
      %p100 = pneg %p94
      %p101 = scmp.eq.s32.totalorder %s21, 1
      %p102 = por %p100, %p101
      %p103 = scmp.ne.s32.totalorder %s95, %s98
      %p104 = scmp.eq.s32.totalorder %s21, 0
      %p105 = por %p103, %p104
      %p106 = scmp.ne.s32.totalorder %s95, %s98
      %p107 = scmp.eq.s32.totalorder %s26, 1
      %p108 = por %p106, %p107
      %p109 = scmp.ne.s32.totalorder %s98, %s99
      %p110 = scmp.eq.s32.totalorder %s26, 0
      %p111 = por %p109, %p110
      %p112 = scmp.ne.s32.totalorder %s98, %s99
      %p113 = scmp.eq.s32.totalorder %s27, 1
      %p114 = por %p112, %p113
      %p116 = scmp.ne.s32.totalorder %s99, %s115
      %p117 = scmp.eq.s32.totalorder %s27, 0
      %p118 = por %p116, %p117
      %s119 = ssub.s32 %s29, %s36
      %p120 = scmp.eq.s32.totalorder %s119, 0
      %s122 = sadd.s32 %s121, 1
      %s123 = scalar_select %p120, %s121, %s122
      %p126 = pneg %p120
      %p127 = scmp.eq.s32.totalorder %s21, 1
      %p128 = por %p126, %p127
      %p129 = scmp.ne.s32.totalorder %s121, %s124
      %p130 = scmp.eq.s32.totalorder %s21, 0
      %p131 = por %p129, %p130
      %p132 = scmp.ne.s32.totalorder %s121, %s124
      %p133 = scmp.eq.s32.totalorder %s26, 1
      %p134 = por %p132, %p133
      %p135 = scmp.ne.s32.totalorder %s124, %s125
      %p136 = scmp.eq.s32.totalorder %s26, 0
      %p137 = por %p135, %p136
      %p138 = scmp.ne.s32.totalorder %s124, %s125
      %p139 = scmp.eq.s32.totalorder %s27, 1
      %p140 = por %p138, %p139
      %p142 = scmp.ne.s32.totalorder %s125, %s141
      %p143 = scmp.eq.s32.totalorder %s27, 0
      %p144 = por %p142, %p143
      %s146 = sadd.s32 %s145, 1
      %p149 = scmp.eq.s32.totalorder %s21, 1
      %p150 = scmp.ne.s32.totalorder %s145, %s147
      %p151 = scmp.eq.s32.totalorder %s21, 0
      %p152 = por %p150, %p151
      %p153 = scmp.ne.s32.totalorder %s145, %s147
      %p154 = scmp.eq.s32.totalorder %s26, 1
      %p155 = por %p153, %p154
      %p156 = scmp.ne.s32.totalorder %s147, %s148
      %p157 = scmp.eq.s32.totalorder %s26, 0
      %p158 = por %p156, %p157
      %p159 = scmp.ne.s32.totalorder %s147, %s148
      %p160 = scmp.eq.s32.totalorder %s27, 1
      %p161 = por %p159, %p160
      %p163 = scmp.ne.s32.totalorder %s148, %s162
      %p164 = scmp.eq.s32.totalorder %s27, 0
      %p165 = por %p163, %p164
      %s166 = ssub.s32 %s28, %s40
      %p167 = scmp.eq.s32.totalorder %s166, 0
      %s169 = sadd.s32 %s168, 1
      %s170 = scalar_select %p167, %s168, %s169
      %p173 = pneg %p167
      %p174 = scmp.eq.s32.totalorder %s21, 1
      %p175 = por %p173, %p174
      %p176 = scmp.ne.s32.totalorder %s168, %s171
      %p177 = scmp.eq.s32.totalorder %s21, 0
      %p178 = por %p176, %p177
      %p179 = scmp.ne.s32.totalorder %s168, %s171
      %p180 = scmp.eq.s32.totalorder %s26, 1
      %p181 = por %p179, %p180
      %p182 = scmp.ne.s32.totalorder %s171, %s172
      %p183 = scmp.eq.s32.totalorder %s26, 0
      %p184 = por %p182, %p183
      %p185 = scmp.ne.s32.totalorder %s171, %s172
      %p186 = scmp.eq.s32.totalorder %s27, 1
      %p187 = por %p185, %p186
      %p189 = scmp.ne.s32.totalorder %s172, %s188
      %p190 = scmp.eq.s32.totalorder %s27, 0
      %p191 = por %p189, %p190
      %p192 = scmp.le.s32.totalorder 1, %s21
      %p193 = scmp.lt.s32.totalorder %s21, 3
      %p194 = pnand %p192, %p193
      %p195 = pneg %p194
      // Predicated region
      $region9: #{tpu_custom_call.1} parent=5 // pred_check
        _
      $region10: #{tpu_custom_call.1} parent=5 // pred_check_branch
        %197 = sbr.rel (%p194) target = $region12
      $region11: #{tpu_custom_call.1} parent=5 // pred_region
        %s198 = ssub.s32 %s21, 1
        // Predicated region
        $region13: #{tpu_custom_call.1} parent=11 // pred_check
          %p199 = pneg %p111
        $region14: #{tpu_custom_call.1} parent=11 // pred_check_branch
          %201 = sbr.rel (%p199) target = $region16
        $region15: #{tpu_custom_call.1} parent=11 // pred_region
          %s203 = ssub.s32 512, 512
          %204 = vsyncadd [#allocation8], %s203
          %s205 = smul.addr %s31, 128
          %s206 = scalar_lea.hbm %s2, %s205
          %s207 = sshll.u32 [#allocation9], 4
          %s208 = int_to_ptr.vmem [resolvable:$true] %s207
          %213 = dma.hbm_to_vmem [thread:$0]  %s206, 512, %s208, [#allocation8], 128, 128, 8
        $region16: #{tpu_custom_call.1} parent=11 // pred_fallthru
          _
        // Predicated region
        $region17: #{tpu_custom_call.1} parent=11 // pred_check
          %p214 = pneg %p137
        $region18: #{tpu_custom_call.1} parent=11 // pred_check_branch
          %216 = sbr.rel (%p214) target = $region20
        $region19: #{tpu_custom_call.1} parent=11 // pred_region
          %p217 = scmp.lt.s32.totalorder %s31, 0
          %s218 = scalar_select %p217, %s31, 0
          %s219 = scalar_lea.vmem %s3, %s218
        $region20: #{tpu_custom_call.1} parent=11 // pred_fallthru
          _
        // Predicated region
        $region21: #{tpu_custom_call.1} parent=11 // pred_check
          %p220 = pneg %p158
        $region22: #{tpu_custom_call.1} parent=11 // pred_check_branch
          %222 = sbr.rel (%p220) target = $region24
        $region23: #{tpu_custom_call.1} parent=11 // pred_region
          _
        $region24: #{tpu_custom_call.1} parent=11 // pred_fallthru
          _
      $region12: #{tpu_custom_call.1} parent=5 // pred_fallthru
        _
      %p223 = scmp.lt.s32.totalorder %s21, 2
      // Predicated region
      $region25: #{tpu_custom_call.1} parent=5 // pred_check
        %p224 = pneg %p223
      $region26: #{tpu_custom_call.1} parent=5 // pred_check_branch
        %226 = sbr.rel (%p224) target = $region28
      $region27: #{tpu_custom_call.1} parent=5 // pred_region
        // Predicated region
        $region29: #{tpu_custom_call.1} parent=27 // pred_check
          %p227 = pneg %p53
        $region30: #{tpu_custom_call.1} parent=27 // pred_check_branch
          %229 = sbr.rel (%p227) target = $region32
        $region31: #{tpu_custom_call.1} parent=27 // pred_region
          %s230 = sand.u32 %s43, 1
          %s231 = scalar_lea.sflag [#allocation5], %s230
          %s232 = sand.u32 %s43, 1
          %s233 = smul.addr %s232, 8
          %s234 = scalar_lea.vmem [#allocation4], %s233
          %s236 = ssub.s32 128, 128
          %237 = vsyncadd %s231, %s236
          %s238 = smul.addr %s28, 128
          %s239 = scalar_lea.hbm %s0, %s238
          %s241 = sshll.u32 %s234, 4
          %s242 = int_to_ptr.vmem [resolvable:$true] %s241
          %244 = dma.hbm_to_vmem [thread:$0]  %s239, 128, %s242, %s231
        $region32: #{tpu_custom_call.1} parent=27 // pred_fallthru
          _
        // Predicated region
        $region33: #{tpu_custom_call.1} parent=27 // pred_check
          %p245 = pneg %p79
        $region34: #{tpu_custom_call.1} parent=27 // pred_check_branch
          %247 = sbr.rel (%p245) target = $region36
        $region35: #{tpu_custom_call.1} parent=27 // pred_region
          %s248 = sand.u32 %s21, 1
          %s249 = scalar_lea.sflag [#allocation8], %s248
          %s250 = sand.u32 %s69, 1
          %s251 = smul.addr %s250, 8
          %s252 = scalar_lea.vmem [#allocation7], %s251
          %s254 = ssub.s32 128, 128
          %255 = vsyncadd %s249, %s254
          %s256 = smul.addr %s28, 128
          %s257 = scalar_lea.hbm %s1, %s256
          %s259 = sshll.u32 %s252, 4
          %s260 = int_to_ptr.vmem [resolvable:$true] %s259
          %262 = dma.hbm_to_vmem [thread:$0]  %s257, 128, %s260, %s249
        $region36: #{tpu_custom_call.1} parent=27 // pred_fallthru
          _
      $region28: #{tpu_custom_call.1} parent=5 // pred_fallthru
        _
      %p263 = scmp.le.s32.totalorder 1, %s21
      %p264 = scmp.lt.s32.totalorder %s21, 3
      %p265 = pnand %p263, %p264
      %p266 = pneg %p265
      // Predicated region
      $region37: #{tpu_custom_call.1} parent=5 // pred_check
        _
      $region38: #{tpu_custom_call.1} parent=5 // pred_check_branch
        %268 = sbr.rel (%p265) target = $region40
      $region39: #{tpu_custom_call.1} parent=5 // pred_region
        %s269 = ssub.s32 %s21, 1
        %s270 = sand.u32 %s46, 1
        %s271 = scalar_lea.sflag [#allocation5], %s270
        %s272 = sand.u32 %s46, 1
        %s273 = smul.addr %s272, 8
        %s274 = scalar_lea.vmem [#allocation4], %s273
        // Predicated region
        $region41: #{tpu_custom_call.1} parent=39 // pred_check
          %p275 = pneg %p59
        $region42: #{tpu_custom_call.1} parent=39 // pred_check_branch
          %277 = sbr.rel (%p275) target = $region44
        $region43: #{tpu_custom_call.1} parent=39 // pred_region
          %278 = dma.done %s271, 128
        $region44: #{tpu_custom_call.1} parent=39 // pred_fallthru
          _
        %s279 = sand.u32 %s26, 1
        %s280 = scalar_lea.sflag [#allocation8], %s279
        %s281 = sand.u32 %s72, 1
        %s282 = smul.addr %s281, 8
        %s283 = scalar_lea.vmem [#allocation7], %s282
        // Predicated region
        $region45: #{tpu_custom_call.1} parent=39 // pred_check
          %p284 = pneg %p85
        $region46: #{tpu_custom_call.1} parent=39 // pred_check_branch
          %286 = sbr.rel (%p284) target = $region48
        $region47: #{tpu_custom_call.1} parent=39 // pred_region
          %287 = dma.done %s280, 128
        $region48: #{tpu_custom_call.1} parent=39 // pred_fallthru
          _
        // Predicated region
        $region49: #{tpu_custom_call.1} parent=39 // pred_check
          %p288 = pneg %p111
        $region50: #{tpu_custom_call.1} parent=39 // pred_check_branch
          %290 = sbr.rel (%p288) target = $region52
        $region51: #{tpu_custom_call.1} parent=39 // pred_region
          %291 = dma.done [#allocation8], 512
        $region52: #{tpu_custom_call.1} parent=39 // pred_fallthru
          _
        %s292 = sand.u32 %s46, 1
        %s293 = scalar_lea.sflag [#allocation5], %s292
        %s294 = sand.u32 %s46, 1
        %s295 = smul.addr %s294, 8
        %s296 = scalar_lea.vmem [#allocation4], %s295
        %p297 = pneg %p59
        %p298 = pneg %p56
        %s299 = sand.u32 %s26, 1
        %s300 = scalar_lea.sflag [#allocation8], %s299
        %s301 = sand.u32 %s72, 1
        %s302 = smul.addr %s301, 8
        %s303 = scalar_lea.vmem [#allocation7], %s302
        %p304 = pneg %p85
        %p305 = pneg %p82
        %p306 = pneg %p111
        %p307 = pneg %p108
        %p308 = scmp.lt.s32.totalorder %s31, 0
        %s309 = scalar_select %p308, %s31, 0
        %s310 = scalar_lea.vmem %s3, %s309
        %p311 = pneg %p137
        %p312 = pneg %p134
        %p313 = pneg %p158
        %p314 = pneg %p155
        %p315 = pneg %p184
        %p316 = pneg %p181
        %s317 = sand.u32 %s171, 1
        %s318 = scalar_lea.sflag [#allocation6], %s317
        %s319 = sand.u32 %s171, 1
        %s320 = smul.addr %s319, 8
        %s321 = scalar_lea.vmem [#allocation10], %s320
        %p322 = scmp.lt.s32.totalorder %s31, 0
        %s323 = scalar_select %p322, %s31, 0
        %s324 = scalar_lea.vmem %s3, %s323
        %p325 = scmp.eq.s32.totalorder %s31, 0
        // Predicated region
        $region53: #{tpu_custom_call.1} parent=39 // pred_check
          %p326 = pneg %p325
        $region54: #{tpu_custom_call.1} parent=39 // pred_check_branch
          %328 = sbr.rel (%p326) target = $region56
        $region55: #{tpu_custom_call.1} parent=39 // pred_region
          %vm329 = vcmask 261120
          %330 = vst.msk [vmem:[#allocation2] sm:$0xff] %vm329, 0.0
        $region56: #{tpu_custom_call.1} parent=39 // pred_fallthru
          _
        %v331 = vld [vmem:[#allocation9] sm:$0xff]
        %v332 = vld [vmem:[#allocation9 + $0x8] sm:$0xff]
        %v333 = vld [vmem:[#allocation9 + $0x10] sm:$0xff]
        %v334 = vld [vmem:[#allocation9 + $0x18] sm:$0xff]
        %v335 = vld [vmem:[%s283] sm:$0xff]
        %v336 = vld [vmem:[%s274] sm:$0xff]
        %v337 = vsub.f32 %v335, %v336
        %vm338 = vcmask 261120
        %v340 = vsel %vm338, %v337, 0
        %342 = vmatprep.subr.mxu0 0.0
        %343 = vmatpush1.msra.mxu0 %v331
        %344 = vmatprep.subr.mxu0 0.0
        %345 = vmatpush1.msra.mxu0 %v332
        %346 = vmatprep.subr.mxu0 0.0
        %347 = vmatpush1.msra.mxu0 %v333
        %348 = vmatprep.subr.mxu0 0.0
        %349 = vmatpush1.msra.mxu0 %v334
        %350 = vmatprep.subr.mxu0 0.0
        %351 = vmatpush1.msra.mxu0 0.0
        %352 = vmatprep.subr.mxu0 0.0
        %353 = vmatpush1.msra.mxu0 0.0
        %354 = vmatprep.subr.mxu0 0.0
        %355 = vmatpush1.msra.mxu0 0.0
        %356 = vmatprep.subr.mxu0 0.0
        %357 = vmatpush1.msra.mxu0 0.0
        %358 = vmatprep.subr.mxu0 0.0
        %359 = vmatpush1.msra.mxu0 0.0
        %360 = vmatprep.subr.mxu0 0.0
        %361 = vmatpush1.msra.mxu0 0.0
        %362 = vmatprep.subr.mxu0 0.0
        %363 = vmatpush1.msra.mxu0 0.0
        %364 = vmatprep.subr.mxu0 0.0
        %365 = vmatpush1.msra.mxu0 0.0
        %366 = vmatprep.subr.mxu0 0.0
        %367 = vmatpush1.msra.mxu0 0.0
        %368 = vmatprep.subr.mxu0 0.0
        %369 = vmatpush1.msra.mxu0 0.0
        %370 = vmatprep.subr.mxu0 0.0
        %371 = vmatpush1.msra.mxu0 0.0
        %372 = vmatprep.subr.mxu0 0.0
        %373 = vmatpush1.msra.mxu0 0.0
        %374 = vmatprep.subr.mxu0 0.0
        %375 = vmatpush1.msra.mxu0 0.0
        %376 = vmatprep.subr.mxu0 0.0
        %377 = vmatpush1.msra.mxu0 0.0
        %378 = vmatprep.subr.mxu0 0.0
        %379 = vmatpush1.msra.mxu0 0.0
        %380 = vmatprep.subr.mxu0 0.0
        %381 = vmatpush1.msra.mxu0 0.0
        %382 = vmatprep.subr.mxu0 0.0
        %383 = vmatpush1.msra.mxu0 0.0
        %384 = vmatprep.subr.mxu0 0.0
        %385 = vmatpush1.msra.mxu0 0.0
        %386 = vmatprep.subr.mxu0 0.0
        %387 = vmatpush1.msra.mxu0 0.0
        %388 = vmatprep.subr.mxu0 0.0
        %389 = vmatpush1.msra.mxu0 0.0
        %390 = vmatprep.subr.mxu0 0.0
        %391 = vmatpush1.msra.mxu0 0.0
        %392 = vmatprep.subr.mxu0 0.0
        %393 = vmatpush1.msra.mxu0 0.0
        %394 = vmatprep.subr.mxu0 0.0
        %395 = vmatpush1.msra.mxu0 0.0
        %396 = vmatprep.subr.mxu0 0.0
        %397 = vmatpush1.msra.mxu0 0.0
        %398 = vmatprep.subr.mxu0 0.0
        %399 = vmatpush1.msra.mxu0 0.0
        %400 = vmatprep.subr.mxu0 0.0
        %401 = vmatpush1.msra.mxu0 0.0
        %402 = vmatprep.subr.mxu0 0.0
        %403 = vmatpush1.msra.mxu0 0.0
        %404 = vmatprep.subr.mxu0 0.0
        %405 = vmatpush1.msra.mxu0 0.0
        %406 = vmatprep.mubr.f32.mxu0 0.0
        %407 = vmatmul.mubr.f32.gmra.mrb[0].mxu0 %v340
        %v408 = vpop.f32.mrb[0].mxu0
        %v409 = vadd.f32 0.0, %v408
        %v410 = vpop.f32.mrb[0].mxu0
        %411 = vdwg.mxu0
        %v412 = vld [vmem:[%s324] sm:$0x1]
        %s413 = sld [smem:[#allocation3]]
        %v414 = vstv %s413
        %v415 = vrcp.pop %v414
        %v416 = vmul.f32 %v412, %v415
        %v417 = vxor.u32 %v416, 2147483648
        %v418 = vmul.f32 %v417, 1.442695
        %v419 = vpow.pop %v418
        %v420 = vadd.f32 %v419, 1.0
        %v421 = vrcp.pop %v420
        %v422 = vmul.f32 1.0, %v421
        %v424 = vlaneseq
        %v425 = vshrl.u32 %v424, 7
        %v426 = vsub.s32 0, %v425
        %v427 = vrot.slane %v422, %v426
        %v429 = vmul.f32 %v427, %v409
        %v430 = vld [vmem:[#allocation2] sm:$0xff]
        %v432 = vsel %vm338, %v429, 0
        %v435 = vsel %vm338, %v331, 0
        %v438 = vsel %vm338, %v332, 0
        %v441 = vsel %vm338, %v333, 0
        %v444 = vsel %vm338, %v334, 0
        %446 = vmatprep.subr.mxu0 0.0
        %447 = vmatpush1.xpose.msra.mxu0 %v435
        %448 = vmatprep.subr.mxu0 0.0
        %449 = vmatpush1.xpose.msra.mxu0 %v438
        %450 = vmatprep.subr.mxu0 0.0
        %451 = vmatpush1.xpose.msra.mxu0 %v441
        %452 = vmatprep.subr.mxu0 0.0
        %453 = vmatpush1.xpose.msra.mxu0 %v444
        %454 = vmatprep.subr.mxu0 0.0
        %455 = vmatpush1.xpose.msra.mxu0 0.0
        %456 = vmatprep.subr.mxu0 0.0
        %457 = vmatpush1.xpose.msra.mxu0 0.0
        %458 = vmatprep.subr.mxu0 0.0
        %459 = vmatpush1.xpose.msra.mxu0 0.0
        %460 = vmatprep.subr.mxu0 0.0
        %461 = vmatpush1.xpose.msra.mxu0 0.0
        %462 = vmatprep.subr.mxu0 0.0
        %463 = vmatpush1.xpose.msra.mxu0 0.0
        %464 = vmatprep.subr.mxu0 0.0
        %465 = vmatpush1.xpose.msra.mxu0 0.0
        %466 = vmatprep.subr.mxu0 0.0
        %467 = vmatpush1.xpose.msra.mxu0 0.0
        %468 = vmatprep.subr.mxu0 0.0
        %469 = vmatpush1.xpose.msra.mxu0 0.0
        %470 = vmatprep.subr.mxu0 0.0
        %471 = vmatpush1.xpose.msra.mxu0 0.0
        %472 = vmatprep.subr.mxu0 0.0
        %473 = vmatpush1.xpose.msra.mxu0 0.0
        %474 = vmatprep.subr.mxu0 0.0
        %475 = vmatpush1.xpose.msra.mxu0 0.0
        %476 = vmatprep.subr.mxu0 0.0
        %477 = vmatpush1.xpose.msra.mxu0 0.0
        %478 = vmatprep.subr.mxu0 0.0
        %479 = vmatpush1.xpose.msra.mxu0 0.0
        %480 = vmatprep.subr.mxu0 0.0
        %481 = vmatpush1.xpose.msra.mxu0 0.0
        %482 = vmatprep.subr.mxu0 0.0
        %483 = vmatpush1.xpose.msra.mxu0 0.0
        %484 = vmatprep.subr.mxu0 0.0
        %485 = vmatpush1.xpose.msra.mxu0 0.0
        %486 = vmatprep.subr.mxu0 0.0
        %487 = vmatpush1.xpose.msra.mxu0 0.0
        %488 = vmatprep.subr.mxu0 0.0
        %489 = vmatpush1.xpose.msra.mxu0 0.0
        %490 = vmatprep.subr.mxu0 0.0
        %491 = vmatpush1.xpose.msra.mxu0 0.0
        %492 = vmatprep.subr.mxu0 0.0
        %493 = vmatpush1.xpose.msra.mxu0 0.0
        %494 = vmatprep.subr.mxu0 0.0
        %495 = vmatpush1.xpose.msra.mxu0 0.0
        %496 = vmatprep.subr.mxu0 0.0
        %497 = vmatpush1.xpose.msra.mxu0 0.0
        %498 = vmatprep.subr.mxu0 0.0
        %499 = vmatpush1.xpose.msra.mxu0 0.0
        %500 = vmatprep.subr.mxu0 0.0
        %501 = vmatpush1.xpose.msra.mxu0 0.0
        %502 = vmatprep.subr.mxu0 0.0
        %503 = vmatpush1.xpose.msra.mxu0 0.0
        %504 = vmatprep.subr.mxu0 0.0
        %505 = vmatpush1.xpose.msra.mxu0 0.0
        %506 = vmatprep.subr.mxu0 0.0
        %507 = vmatpush1.xpose.msra.mxu0 0.0
        %508 = vmatprep.subr.mxu0 0.0
        %509 = vmatpush1.xpose.msra.mxu0 0.0
        %510 = vmatprep.mubr.f32.mxu0 0.0
        %511 = vmatmul.mubr.f32.gmra.mrb[0].mxu0 %v432
        %v512 = vpop.f32.mrb[0].mxu0
        %v513 = vadd.f32 0.0, %v512
        %v514 = vpop.f32.mrb[0].mxu0
        %515 = vdwg.mxu0
        %v516 = vadd.f32 %v430, %v513
        %517 = vst.msk [vmem:[#allocation2] sm:$0xff] %vm338, %v516
        // Predicated region
        $region57: #{tpu_custom_call.1} parent=39 // pred_check
          %p518 = pneg %p325
        $region58: #{tpu_custom_call.1} parent=39 // pred_check_branch
          %520 = sbr.rel (%p518) target = $region60
        $region59: #{tpu_custom_call.1} parent=39 // pred_region
          %v521 = vld [vmem:[%s274] sm:$0xff]
          %v522 = vld [vmem:[#allocation2] sm:$0xff]
          %v523 = vadd.f32 %v521, %v522
          %524 = vst.msk [vmem:[%s321] sm:$0xff] %vm338, %v523
        $region60: #{tpu_custom_call.1} parent=39 // pred_fallthru
          _
        %s525 = sand.u32 %s171, 1
        %s526 = scalar_lea.sflag [#allocation6], %s525
        %s527 = sand.u32 %s171, 1
        %s528 = smul.addr %s527, 8
        %s529 = scalar_lea.vmem [#allocation10], %s528
        // Predicated region
        $region61: #{tpu_custom_call.1} parent=39 // pred_check
          %p530 = pneg %p181
        $region62: #{tpu_custom_call.1} parent=39 // pred_check_branch
          %532 = sbr.rel (%p530) target = $region64
        $region63: #{tpu_custom_call.1} parent=39 // pred_region
          %s534 = ssub.s32 128, 128
          %535 = vsyncadd %s526, %s534
          %s536 = smul.addr %s30, 128
          %s537 = scalar_lea.hbm %s5, %s536
          %s539 = sshll.u32 %s529, 4
          %s540 = int_to_ptr.vmem [resolvable:$true] %s539
          %542 = dma.vmem_to_hbm [thread:$0]  %s540, 128, %s537, %s526
        $region64: #{tpu_custom_call.1} parent=39 // pred_fallthru
          _
      $region40: #{tpu_custom_call.1} parent=5 // pred_fallthru
        _
      %p543 = scmp.le.s32.totalorder 2, %s21
      // Predicated region
      $region65: #{tpu_custom_call.1} parent=5 // pred_check
        %p544 = pneg %p543
      $region66: #{tpu_custom_call.1} parent=5 // pred_check_branch
        %546 = sbr.rel (%p544) target = $region68
      $region67: #{tpu_custom_call.1} parent=5 // pred_region
        %s547 = ssub.s32 %s21, 2
        // Predicated region
        $region69: #{tpu_custom_call.1} parent=67 // pred_check
          %p548 = pneg %p187
        $region70: #{tpu_custom_call.1} parent=67 // pred_check_branch
          %550 = sbr.rel (%p548) target = $region72
        $region71: #{tpu_custom_call.1} parent=67 // pred_region
          %s551 = sand.u32 %s172, 1
          %s552 = scalar_lea.sflag [#allocation6], %s551
          %s553 = sand.u32 %s172, 1
          %s554 = smul.addr %s553, 8
          %s555 = scalar_lea.vmem [#allocation10], %s554
          %556 = dma.done %s552, 128
        $region72: #{tpu_custom_call.1} parent=67 // pred_fallthru
          _
      $region68: #{tpu_custom_call.1} parent=5 // pred_fallthru
        _
    $region6: #{tpu_custom_call.1} parent=1 // loop_footer
      %s25 = sadd.s32 1, %s21
    $region7: #{tpu_custom_call.1} parent=1 // loop_footer_branch
      %20 = sbr.rel target = $region3
    $region8: #{tpu_custom_call.1} parent=1 // loop_exit
      _
    %557 = vsyncpa [#allocation5], 1
    %s558 = scalar_lea.sflag [#allocation5], 1
    %559 = vsyncpa %s558, 1
    %560 = vsyncpa [#allocation8], 1
    %s561 = scalar_lea.sflag [#allocation8], 1
    %562 = vsyncpa %s561, 1
    %563 = vsyncpa [#allocation6], 1
    %s564 = scalar_lea.sflag [#allocation6], 1
    %565 = vsyncpa %s564, 1

</llo_original>
